<compile_context>
chip_gen: v7x
topology: tpu7x:2x2x1
jax: 0.10.0
libtpu: 0.0.40
codegen_flags: <defaults>
</compile_context>

<pallas_src>
import functools

import jax
import jax.numpy as jnp
from jax.experimental import pallas as pl
from jax.experimental.pallas import tpu as pltpu


def _ginf_loss_kernel(*refs, total_b, block_rows, sigma, mu, has_noise):
    if has_noise:
        delta_ref, logits_ref, targets_ref, noise_ref, out_ref = refs
    else:
        delta_ref, logits_ref, targets_ref, out_ref = refs
        noise_ref = None

    i = pl.program_id(0)

    logits = logits_ref[...].astype(jnp.float32)      # (TB, C), cast in-kernel (VPU)
    delta = delta_ref[...].astype(jnp.float32)        # (1, C), resident across grid steps

    if has_noise:
        # gaussian_noise = randn * sigma + mu   (matches torch.randn_like * sigma + mu)
        noise = noise_ref[...].astype(jnp.float32) * sigma + mu
        inflated = logits + delta * noise
    elif mu != 0.0:
        # sigma == 0  ->  noise == mu exactly
        inflated = logits + delta * mu
    else:
        inflated = logits

    # Numerically-stable log-softmax / cross-entropy (f32 accumulation).
    m = jnp.max(inflated, axis=-1, keepdims=True)                      # (TB, 1)
    shifted = inflated - m                                             # (TB, C)
    lse = jnp.log(jnp.sum(jnp.exp(shifted), axis=-1, keepdims=True))   # (TB, 1)

    labels = targets_ref[...]                                          # (TB, 1) int32
    tb, c = inflated.shape
    col_ids = jax.lax.broadcasted_iota(jnp.int32, (tb, c), 1)
    # Labels are assumed valid class indices in [0, C); out-of-range labels degenerate
    # to loss = lse (same behaviour as a zero one-hot gather).
    onehot = (col_ids == labels).astype(jnp.float32)                   # (TB, C)
    tgt_logit = jnp.sum(shifted * onehot, axis=-1, keepdims=True)      # (TB, 1)

    per_sample = lse - tgt_logit                                       # (TB, 1) = -log p(target)

    # Mask padded rows of the last (possibly partial) batch tile.  jnp.where (not a
    # multiply) so garbage/NaN in the padded region cannot poison the sum.
    row_ids = jax.lax.broadcasted_iota(jnp.int32, (tb, 1), 0) + i * block_rows
    per_sample = jnp.where(row_ids < total_b, per_sample, 0.0)

    # Partial (un-normalized) sum for this tile, broadcast over a full (8, 128) tile so
    # the store is lane-dense / unmasked.  The wrapper reads [:, 0, 0] and applies 1/B.
    out_ref[...] = jnp.broadcast_to(jnp.sum(per_sample), out_ref.shape)


def ginf_loss(logits, targets, class_counts, *, mu=0.0, sigma=0.1, eps=1e-6,
              noise_key=None, block_rows=None):
    """JAX/Pallas equivalent of GInfLoss.forward.

    logits: [B, C] float (any float dtype; streamed in native dtype, computed in f32)
    targets: [B] int
    class_counts: [C] positive
    noise_key: jax PRNG key for the Gaussian noise (used when sigma > 0).  Pass a fresh
               key every training step; defaults to PRNGKey(0).
    """
    assert logits.ndim == 2, "Logits must be 2D tensor"
    assert targets.ndim == 1, "Targets must be 1D tensor"
    assert logits.shape[0] == targets.shape[0], "Batch size mismatch"
    assert sigma >= 0, "Sigma must be non-negative"
    B, C = logits.shape
    assert class_counts.shape[0] == C

    counts = class_counts.astype(jnp.float32)
    n_max = jnp.max(counts)
    delta_base = (jnp.log(n_max + eps) - jnp.log(counts + eps)).reshape(1, C)   # [1, C]

    has_noise = float(sigma) != 0.0

    # Batch tile: keep the double-buffered input stream + in-kernel f32 working set well
    # under the scoped-VMEM default on every generation (v7x has only 64 MiB total VMEM).
    if block_rows is None:
        itemsize = jnp.dtype(logits.dtype).itemsize
        stream_bytes_per_row = C * itemsize * (2 if has_noise else 1)   # logits (+ noise)
        work_bytes_per_row = 6 * C * 4                                  # f32 temporaries
        budget = 8 * 1024 * 1024
        denom = max(1, 2 * stream_bytes_per_row + work_bytes_per_row)
        cap = max(8, min(1024, budget // denom))
        cap = max(8, (cap // 8) * 8)          # sublane-aligned tile
        block_rows = B if B <= cap else cap
    TB = int(block_rows)
    num_blocks = pl.cdiv(B, TB)

    targets2d = targets.astype(jnp.int32).reshape(B, 1)

    kernel = functools.partial(
        _ginf_loss_kernel,
        total_b=B, block_rows=TB, sigma=float(sigma), mu=float(mu),
        has_noise=has_noise)

    in_specs = [
        pl.BlockSpec((1, C), lambda i: (0, 0)),                     # delta_base, resident
        pl.BlockSpec((TB, C), lambda i: (i, 0)),                    # logits tile (native dtype)
        pl.BlockSpec((TB, 1), lambda i: (i, 0)),                    # targets tile
    ]
    args = [delta_base, logits, targets2d]

    if has_noise:
        if noise_key is None:
            noise_key = jax.random.PRNGKey(0)
        # Standard-normal draw in the logits dtype (halves noise bandwidth for bf16);
        # the sigma/mu affine transform is applied on the VPU inside the kernel.
        noise = jax.random.normal(noise_key, (B, C), dtype=logits.dtype)
        in_specs.append(pl.BlockSpec((TB, C), lambda i: (i, 0)))    # noise tile
        args.append(noise)

    partials = pl.pallas_call(
        kernel,
        out_shape=jax.ShapeDtypeStruct((num_blocks, 8, 128), jnp.float32),
        grid=(num_blocks,),
        in_specs=in_specs,
        out_specs=pl.BlockSpec((1, 8, 128), lambda i: (i, 0, 0)),   # per-block partial sum
        compiler_params=pltpu.CompilerParams(
            dimension_semantics=("parallel",)),                     # megacore-friendly
    )(*args)

    # Final mean with the TOTAL batch size, outside the kernel.
    return jnp.sum(partials[:, 0, 0]) / jnp.float32(B)


def _reference_loss(logits, targets, class_counts, noise, eps=1e-6):
    counts = class_counts.astype(jnp.float32)
    delta_base = jnp.log(jnp.max(counts) + eps) - jnp.log(counts + eps)
    inflated = logits.astype(jnp.float32) + delta_base[None, :] * noise.astype(jnp.float32)
    logp = jax.nn.log_softmax(inflated, axis=-1)
    nll = -jnp.take_along_axis(logp, targets[:, None], axis=-1)[:, 0]
    return jnp.mean(nll)


if __name__ == "__main__":
    B, C = 16, 128
    key = jax.random.PRNGKey(0)
    k_logits, k_targets, k_noise = jax.random.split(key, 3)

    logits = jax.random.normal(k_logits, (B, C), dtype=jnp.float32)
    targets = jax.random.randint(k_targets, (B,), 0, C, dtype=jnp.int32)
    # Deterministic long-tailed class counts (all positive).
    class_counts = jnp.array([1000.0 / (i + 1) for i in range(C)], dtype=jnp.float32)

    # 1) sigma=0, mu=0  ->  inflated == logits: exact check vs pure-JAX cross-entropy,
    #    exercising the 2-block tiled grid (block_rows=8 -> num_blocks=2).
    loss0 = ginf_loss(logits, targets, class_counts, mu=0.0, sigma=0.0, block_rows=8)
    loss0 = jax.block_until_ready(loss0)
    ref0 = _reference_loss(logits, targets, class_counts, jnp.zeros((B, C), jnp.float32))
    assert jnp.allclose(loss0, ref0, atol=1e-5, rtol=1e-5), (loss0, ref0)

    # 2) sigma=0, mu=1  ->  inflated == logits + delta_base: checks the delta*mu path.
    loss1 = ginf_loss(logits, targets, class_counts, mu=1.0, sigma=0.0, block_rows=8)
    loss1 = jax.block_until_ready(loss1)
    ref1 = _reference_loss(logits, targets, class_counts, jnp.ones((B, C), jnp.float32))
    assert jnp.allclose(loss1, ref1, atol=1e-5, rtol=1e-5), (loss1, ref1)

    # 3) Full path (sigma=0.1, streamed Gaussian noise): exact check vs pure-JAX
    #    reference using the same noise draw.
    loss2 = ginf_loss(logits, targets, class_counts, mu=0.0, sigma=0.1,
                      noise_key=k_noise, block_rows=8)
    loss2 = jax.block_until_ready(loss2)
    noise2 = jax.random.normal(k_noise, (B, C), dtype=logits.dtype) * 0.1 + 0.0
    ref2 = _reference_loss(logits, targets, class_counts, noise2)
    assert jnp.allclose(loss2, ref2, atol=1e-5, rtol=1e-5), (loss2, ref2)
    assert bool(jnp.isfinite(loss2)), loss2

    print("KERNEL_OK")
</pallas_src>

<mosaic_0001>
module attributes {stable_mosaic.version = 11 : i64} {
  func.func @_ginf_loss_kernel(%arg0: i32, %arg1: memref<1x128xf32, #tpu.memory_space<vmem>>, %arg2: memref<8x128xf32, #tpu.memory_space<vmem>>, %arg3: memref<8x1xi32, #tpu.memory_space<vmem>>, %arg4: memref<1x8x128xf32, #tpu.memory_space<vmem>>) attributes {dimension_semantics = [#tpu.dimension_semantics<parallel>], iteration_bounds = array<i64: 2>, scalar_prefetch = 0 : i64, scratch_operands = 0 : i64, tpu.core_type = #tpu.core_type<tc>, window_params = [{pipeline_mode = #tpu.pipeline_mode<synchronous>, transform_indices = @transform_0, window_bounds = array<i64: 1, 128>}, {transform_indices = @transform_1, window_bounds = array<i64: 8, 128>}, {transform_indices = @transform_2, window_bounds = array<i64: 8, 1>}, {transform_indices = @transform_3, window_bounds = array<i64: 1, 8, 128>}]} {
    %c0 = arith.constant 0 : index
    %c0_0 = arith.constant 0 : index
    %0 = vector.load %arg2[%c0, %c0_0] : memref<8x128xf32, #tpu.memory_space<vmem>>, vector<8x128xf32>
    %cst = arith.constant dense<0xFF800000> : vector<8xf32>
    %1 = vector.multi_reduction <maximumf>, %0, %cst [1] : vector<8x128xf32> to vector<8xf32>
    %2 = vector.shape_cast %1 : vector<8xf32> to vector<8x1xf32>
    %3 = vector.broadcast %2 : vector<8x1xf32> to vector<8x128xf32>
    %4 = arith.subf %0, %3 : vector<8x128xf32>
    %5 = math.exp %4 : vector<8x128xf32>
    %cst_1 = arith.constant dense<0.000000e+00> : vector<8xf32>
    %6 = vector.multi_reduction <add>, %5, %cst_1 [1] : vector<8x128xf32> to vector<8xf32>
    %7 = vector.shape_cast %6 : vector<8xf32> to vector<8x1xf32>
    %8 = math.log %7 : vector<8x1xf32>
    %c0_2 = arith.constant 0 : index
    %c0_3 = arith.constant 0 : index
    %9 = vector.load %arg3[%c0_2, %c0_3] : memref<8x1xi32, #tpu.memory_space<vmem>>, vector<8x1xi32>
    %10 = tpu.iota {dimensions = array<i32: 1>} : vector<8x128xi32>
    %11 = vector.broadcast %9 : vector<8x1xi32> to vector<8x128xi32>
    %12 = arith.cmpi eq, %10, %11 : vector<8x128xi32>
    %13 = arith.extui %12 : vector<8x128xi1> to vector<8x128xi32>
    %14 = arith.sitofp %13 : vector<8x128xi32> to vector<8x128xf32>
    %15 = arith.mulf %4, %14 : vector<8x128xf32>
    %cst_4 = arith.constant dense<0.000000e+00> : vector<8xf32>
    %16 = vector.multi_reduction <add>, %15, %cst_4 [1] : vector<8x128xf32> to vector<8xf32>
    %17 = vector.shape_cast %16 : vector<8xf32> to vector<8x1xf32>
    %18 = arith.subf %8, %17 : vector<8x1xf32>
    %19 = tpu.iota {dimensions = array<i32: 0>} : vector<8x1xi32>
    %c8_i32 = arith.constant 8 : i32
    %20 = arith.muli %arg0, %c8_i32 : i32
    %21 = vector.broadcast %20 : i32 to vector<8x1xi32>
    %22 = arith.addi %19, %21 : vector<8x1xi32>
    %c16_i32 = arith.constant 16 : i32
    %23 = vector.broadcast %c16_i32 : i32 to vector<8x1xi32>
    %24 = arith.cmpi slt, %22, %23 : vector<8x1xi32>
    %cst_5 = arith.constant 0.000000e+00 : f32
    %25 = vector.broadcast %cst_5 : f32 to vector<8x1xf32>
    %26 = arith.select %24, %18, %25 : vector<8x1xi1>, vector<8x1xf32>
    %27 = vector.shape_cast %26 : vector<8x1xf32> to vector<1x8x1xf32>
    %cst_6 = arith.constant dense<0.000000e+00> : vector<1xf32>
    %28 = vector.multi_reduction <add>, %27, %cst_6 [1, 2] : vector<1x8x1xf32> to vector<1xf32>
    %29 = vector.shape_cast %28 : vector<1xf32> to vector<1x1x1xf32>
    %30 = vector.extract %29[0, 0, 0] : f32 from vector<1x1x1xf32>
    %31 = vector.broadcast %30 : f32 to vector<1x8x128xf32>
    %c0_7 = arith.constant 0 : index
    %c0_8 = arith.constant 0 : index
    %c0_9 = arith.constant 0 : index
    %32 = vector.load %arg4[%c0_7, %c0_8, %c0_9] : memref<1x8x128xf32, #tpu.memory_space<vmem>>, vector<1x8x128xf32>
    tpu.vector_store %arg4[%c0_7, %c0_8, %c0_9], %31 {strides = array<i32>} : memref<1x8x128xf32, #tpu.memory_space<vmem>>, vector<1x8x128xf32>,
    return
  }
  func.func @transform_0(%arg0: i32) -> (i32, i32) {
    %c0_i32 = arith.constant 0 : i32
    %c0_i32_0 = arith.constant 0 : i32
    %c0_i32_1 = arith.constant 0 : i32
    return %c0_i32, %c0_i32_0 : i32, i32
  }
  func.func @transform_1(%arg0: i32) -> (i32, i32) {
    %c0_i32 = arith.constant 0 : i32
    %c0_i32_0 = arith.constant 0 : i32
    return %arg0, %c0_i32 : i32, i32
  }
  func.func @transform_2(%arg0: i32) -> (i32, i32) {
    %c0_i32 = arith.constant 0 : i32
    %c0_i32_0 = arith.constant 0 : i32
    return %arg0, %c0_i32 : i32, i32
  }
  func.func @transform_3(%arg0: i32) -> (i32, i32, i32) {
    %c0_i32 = arith.constant 0 : i32
    %c0_i32_0 = arith.constant 0 : i32
    %c0_i32_1 = arith.constant 0 : i32
    return %arg0, %c0_i32, %c0_i32_0 : i32, i32, i32
  }
}

</mosaic_0001>

<llo_original>
// kernel: tpu_custom_call.1
$region0: #{tpu_custom_call.1}
  #allocation0 [shape = 'u32[]', space=smem, size = 0x4, offset = 0x4, fixed_abs, tag = 'smem constant byte address 0x4 - core index']
  #allocation1 [shape = 'u32[144,128]{1,0:T(1,128)}', space=vmem, size = 0x12000, scoped, tag = 'internal scratch']
  %s0 = inlined_call_operand.vmem [shape: f32[1,128], index: 0, kind: input, shape index: {}]
  %s1 = inlined_call_operand.vmem [shape: f32[16,128], index: 1, kind: input, shape index: {}]
  %s2 = inlined_call_operand.vmem [shape: s32[16,1], index: 2, kind: input, shape index: {}]
  %s3 = inlined_call_operand.hbm [shape: f32[2,8,128], index: 3, kind: output, shape index: {}]
  %s4 = sld [smem:[#allocation0]]
  $region45: #{tpu_custom_call.1} parent=0
    _
  %s6 = ssub.s32 1, %s4
  %s7 = scalar_select 0, %s6, %s4
  $region1: #{tpu_custom_call.1} parent=0
    #allocation2 [shape = 'u8[8192]{0}', space=vmem, size = 0x2000, scoped, tag = 'output window, operand 0']
    #allocation3 [shape = 's32[2]{0}', space=sflag, size = 0x8, scoped, tag = 'scoped memory for tpu_custom_call.1']
    %8 = vsyncpa [#allocation3], 0
    %s9 = scalar_lea.sflag [#allocation3], 1
    %10 = vsyncpa %s9, 0
    loop: start=0, step=1, limit=4
    $region2: #{tpu_custom_call.1} parent=1 // loop_pre_header
      _
    $region3: #{tpu_custom_call.1} parent=1 // loop_header
      %s12 = sphi 0, %s16
      %p13 = scmp.ge.s32.totalorder %s12, 4
      %s20 = sphi 0, %s20
      %s22 = sphi 0, %s20
      %s23 = sphi 0, %s22
      %s37 = sphi 0, %s23
      %s43 = sphi 0, %s45
      %s46 = sphi 0, %s43
      %s47 = sphi 0, %s46
      %s63 = sphi 0, %s47
      %s69 = sphi 0, %s71
      %s72 = sphi 0, %s69
      %s73 = sphi 0, %s72
      %s89 = sphi 0, %s73
      %s95 = sphi 0, %s97
      %s98 = sphi 0, %s95
      %s99 = sphi 0, %s98
      %s115 = sphi 0, %s99
    $region4: #{tpu_custom_call.1} parent=1 // loop_header_branch
      %15 = sbr.rel (%p13) target = $region8
    $region5: #{tpu_custom_call.1} parent=1 // loop_body
      %s17 = ssub.s32 %s12, 1
      %s18 = ssub.s32 %s12, 2
      %s19 = sadd.s32 %s12, 1
      %s21 = sadd.s32 %s20, 1
      %p24 = scmp.eq.s32.totalorder %s12, 1
      %p25 = scmp.ne.s32.totalorder %s20, %s22
      %p26 = scmp.eq.s32.totalorder %s12, 0
      %p27 = por %p25, %p26
      %p28 = scmp.ne.s32.totalorder %s20, %s22
      %p29 = scmp.eq.s32.totalorder %s17, 1
      %p30 = por %p28, %p29
      %p31 = scmp.ne.s32.totalorder %s22, %s23
      %p32 = scmp.eq.s32.totalorder %s17, 0
      %p33 = por %p31, %p32
      %p34 = scmp.ne.s32.totalorder %s22, %s23
      %p35 = scmp.eq.s32.totalorder %s18, 1
      %p36 = por %p34, %p35
      %p38 = scmp.ne.s32.totalorder %s23, %s37
      %p39 = scmp.eq.s32.totalorder %s18, 0
      %p40 = por %p38, %p39
      %s41 = ssub.s32 %s12, %s19
      %p42 = scmp.eq.s32.totalorder %s41, 0
      %s44 = sadd.s32 %s43, 1
      %s45 = scalar_select %p42, %s43, %s44
      %p48 = pneg %p42
      %p49 = scmp.eq.s32.totalorder %s12, 1
      %p50 = por %p48, %p49
      %p51 = scmp.ne.s32.totalorder %s43, %s46
      %p52 = scmp.eq.s32.totalorder %s12, 0
      %p53 = por %p51, %p52
      %p54 = scmp.ne.s32.totalorder %s43, %s46
      %p55 = scmp.eq.s32.totalorder %s17, 1
      %p56 = por %p54, %p55
      %p57 = scmp.ne.s32.totalorder %s46, %s47
      %p58 = scmp.eq.s32.totalorder %s17, 0
      %p59 = por %p57, %p58
      %p60 = scmp.ne.s32.totalorder %s46, %s47
      %p61 = scmp.eq.s32.totalorder %s18, 1
      %p62 = por %p60, %p61
      %p64 = scmp.ne.s32.totalorder %s47, %s63
      %p65 = scmp.eq.s32.totalorder %s18, 0
      %p66 = por %p64, %p65
      %s67 = ssub.s32 %s12, %s19
      %p68 = scmp.eq.s32.totalorder %s67, 0
      %s70 = sadd.s32 %s69, 1
      %s71 = scalar_select %p68, %s69, %s70
      %p74 = pneg %p68
      %p75 = scmp.eq.s32.totalorder %s12, 1
      %p76 = por %p74, %p75
      %p77 = scmp.ne.s32.totalorder %s69, %s72
      %p78 = scmp.eq.s32.totalorder %s12, 0
      %p79 = por %p77, %p78
      %p80 = scmp.ne.s32.totalorder %s69, %s72
      %p81 = scmp.eq.s32.totalorder %s17, 1
      %p82 = por %p80, %p81
      %p83 = scmp.ne.s32.totalorder %s72, %s73
      %p84 = scmp.eq.s32.totalorder %s17, 0
      %p85 = por %p83, %p84
      %p86 = scmp.ne.s32.totalorder %s72, %s73
      %p87 = scmp.eq.s32.totalorder %s18, 1
      %p88 = por %p86, %p87
      %p90 = scmp.ne.s32.totalorder %s73, %s89
      %p91 = scmp.eq.s32.totalorder %s18, 0
      %p92 = por %p90, %p91
      %s93 = ssub.s32 %s12, %s19
      %p94 = scmp.eq.s32.totalorder %s93, 0
      %s96 = sadd.s32 %s95, 1
      %s97 = scalar_select %p94, %s95, %s96
      %p100 = pneg %p94
      %p101 = scmp.eq.s32.totalorder %s12, 1
      %p102 = por %p100, %p101
      %p103 = scmp.ne.s32.totalorder %s95, %s98
      %p104 = scmp.eq.s32.totalorder %s12, 0
      %p105 = por %p103, %p104
      %p106 = scmp.ne.s32.totalorder %s95, %s98
      %p107 = scmp.eq.s32.totalorder %s17, 1
      %p108 = por %p106, %p107
      %p109 = scmp.ne.s32.totalorder %s98, %s99
      %p110 = scmp.eq.s32.totalorder %s17, 0
      %p111 = por %p109, %p110
      %p112 = scmp.ne.s32.totalorder %s98, %s99
      %p113 = scmp.eq.s32.totalorder %s18, 1
      %p114 = por %p112, %p113
      %p116 = scmp.ne.s32.totalorder %s99, %s115
      %p117 = scmp.eq.s32.totalorder %s18, 0
      %p118 = por %p116, %p117
      %p119 = scmp.le.s32.totalorder 1, %s12
      %p120 = scmp.lt.s32.totalorder %s12, 3
      %p121 = pnand %p119, %p120
      %p122 = pneg %p121
      // Predicated region
      $region9: #{tpu_custom_call.1} parent=5 // pred_check
        _
      $region10: #{tpu_custom_call.1} parent=5 // pred_check_branch
        %124 = sbr.rel (%p121) target = $region12
      $region11: #{tpu_custom_call.1} parent=5 // pred_region
        %s125 = ssub.s32 %s12, 1
        // Predicated region
        $region13: #{tpu_custom_call.1} parent=11 // pred_check
          %p126 = pneg %p33
        $region14: #{tpu_custom_call.1} parent=11 // pred_check_branch
          %128 = sbr.rel (%p126) target = $region16
        $region15: #{tpu_custom_call.1} parent=11 // pred_region
          _
        $region16: #{tpu_custom_call.1} parent=11 // pred_fallthru
          _
      $region12: #{tpu_custom_call.1} parent=5 // pred_fallthru
        _
      %p129 = scmp.lt.s32.totalorder %s12, 2
      // Predicated region
      $region17: #{tpu_custom_call.1} parent=5 // pred_check
        %p130 = pneg %p129
      $region18: #{tpu_custom_call.1} parent=5 // pred_check_branch
        %132 = sbr.rel (%p130) target = $region20
      $region19: #{tpu_custom_call.1} parent=5 // pred_region
        // Predicated region
        $region21: #{tpu_custom_call.1} parent=19 // pred_check
          %p133 = pneg %p53
        $region22: #{tpu_custom_call.1} parent=19 // pred_check_branch
          %135 = sbr.rel (%p133) target = $region24
        $region23: #{tpu_custom_call.1} parent=19 // pred_region
          %p136 = scmp.lt.s32.totalorder %s12, 1
          %s137 = scalar_select %p136, %s12, 1
          %s138 = smul.addr %s137, 8
          %s139 = scalar_lea.vmem %s1, %s138
        $region24: #{tpu_custom_call.1} parent=19 // pred_fallthru
          _
        // Predicated region
        $region25: #{tpu_custom_call.1} parent=19 // pred_check
          %p140 = pneg %p79
        $region26: #{tpu_custom_call.1} parent=19 // pred_check_branch
          %142 = sbr.rel (%p140) target = $region28
        $region27: #{tpu_custom_call.1} parent=19 // pred_region
          %p143 = scmp.lt.s32.totalorder %s12, 1
          %s144 = scalar_select %p143, %s12, 1
          %s145 = smul.addr %s144, 8
          %s146 = scalar_lea.vmem %s2, %s145
        $region28: #{tpu_custom_call.1} parent=19 // pred_fallthru
          _
      $region20: #{tpu_custom_call.1} parent=5 // pred_fallthru
        _
      %p147 = scmp.le.s32.totalorder 1, %s12
      %p148 = scmp.lt.s32.totalorder %s12, 3
      %p149 = pnand %p147, %p148
      %p150 = pneg %p149
      // Predicated region
      $region29: #{tpu_custom_call.1} parent=5 // pred_check
        _
      $region30: #{tpu_custom_call.1} parent=5 // pred_check_branch
        %152 = sbr.rel (%p149) target = $region32
      $region31: #{tpu_custom_call.1} parent=5 // pred_region
        %s153 = ssub.s32 %s12, 1
        %p154 = pneg %p33
        %p155 = pneg %p30
        %p156 = scmp.lt.s32.totalorder %s17, 1
        %s157 = scalar_select %p156, %s17, 1
        %s158 = smul.addr %s157, 8
        %s159 = scalar_lea.vmem %s1, %s158
        %p160 = pneg %p59
        %p161 = pneg %p56
        %p162 = scmp.lt.s32.totalorder %s17, 1
        %s163 = scalar_select %p162, %s17, 1
        %s164 = smul.addr %s163, 8
        %s165 = scalar_lea.vmem %s2, %s164
        %p166 = pneg %p85
        %p167 = pneg %p82
        %p168 = pneg %p111
        %p169 = pneg %p108
        %s170 = sand.u32 %s98, 1
        %s171 = scalar_lea.sflag [#allocation3], %s170
        %s172 = sand.u32 %s98, 1
        %s173 = smul.addr %s172, 8
        %s174 = scalar_lea.vmem [#allocation2], %s173
        %p175 = scmp.lt.s32.totalorder %s17, 1
        %s176 = scalar_select %p175, %s17, 1
        %s177 = smul.addr %s176, 8
        %s178 = scalar_lea.vmem %s1, %s177
        %p179 = scmp.lt.s32.totalorder %s17, 1
        %s180 = scalar_select %p179, %s17, 1
        %s181 = smul.addr %s180, 8
        %s182 = scalar_lea.vmem %s2, %s181
        %v183 = vld [vmem:[%s178] sm:$0xff]
        %184 = vmax.xlane.f32.xlu0 %v183
        %v185 = vpop.xlane.xlu0 %184
        %v186 = vsub.f32 %v183, %v185
        %v187 = vmul.f32 %v186, 1.442695
        %v188 = vpow.pop %v187
        %189 = vadd.xlane.f32.xlu0 %v188
        %v190 = vpop.xlane.xlu0 %189
        %v191 = vlog2.pop %v190
        %v192 = vmul.f32 %v191, 0.6931472
        %v193 = vld [vmem:[%s182] sm:$0xff]
        %v194 = vlaneseq
        %v195 = vand.u32 %v194, 127
        %196 = vset.pattern.permute.xlu0 0
        %197 = vperm.xlu0 %196, %v193
        %v198 = vpop.permute.xlu0 %197
        %vm199 = vcmp.eq.s32.totalorder %v195, %v198
        %v200 = vsel %vm199, 1, 0
        %v201 = vcvt.s32.f32 %v200
        %v202 = vmul.f32 %v186, %v201
        %203 = vadd.xlane.f32.xlu0 %v202
        %v204 = vpop.xlane.xlu0 %203
        %v205 = vsub.f32 %v192, %v204
        %v206 = vlaneseq
        %v207 = vshrl.u32 %v206, 7
        %s208 = smul.u32 %s17, 8
        %v209 = vstv %s208
        %v210 = vadd.s32 %v207, %v209
        %vm211 = vcmp.lt.s32.totalorder %v210, 16
        %v212 = vsel %vm211, %v205, 0.0
        %vm213 = vcmask 7168
        %v214 = vsel %vm213, %v212, 0.0
        %215 = vadd.xlane.f32.xlu0 %v214
        %v216 = vpop.xlane.xlu0 %215
        %v217 = vrot.slane %v216, 4
        %v218 = vadd.f32 %v216, %v217
        %v219 = vrot.slane %v218, 2
        %v220 = vadd.f32 %v218, %v219
        %v221 = vrot.slane %v220, 1
        %v222 = vadd.f32 %v220, %v221
        %s223 = vtos %v222
        %v224 = vstv %s223
        %225 = vst [vmem:[%s174] sm:$0xff] %v224
        %s226 = sand.u32 %s98, 1
        %s227 = scalar_lea.sflag [#allocation3], %s226
        %s228 = sand.u32 %s98, 1
        %s229 = smul.addr %s228, 8
        %s230 = scalar_lea.vmem [#allocation2], %s229
        // Predicated region
        $region33: #{tpu_custom_call.1} parent=31 // pred_check
          %p231 = pneg %p108
        $region34: #{tpu_custom_call.1} parent=31 // pred_check_branch
          %233 = sbr.rel (%p231) target = $region36
        $region35: #{tpu_custom_call.1} parent=31 // pred_region
          %s235 = ssub.s32 128, 128
          %236 = vsyncadd %s227, %s235
          %s237 = smul.addr %s17, 128
          %s238 = scalar_lea.hbm %s3, %s237
          %s240 = sshll.u32 %s230, 4
          %s241 = int_to_ptr.vmem [resolvable:$true] %s240
          %243 = dma.vmem_to_hbm [thread:$0]  %s241, 128, %s238, %s227
        $region36: #{tpu_custom_call.1} parent=31 // pred_fallthru
          _
      $region32: #{tpu_custom_call.1} parent=5 // pred_fallthru
        _
      %p244 = scmp.le.s32.totalorder 2, %s12
      // Predicated region
      $region37: #{tpu_custom_call.1} parent=5 // pred_check
        %p245 = pneg %p244
      $region38: #{tpu_custom_call.1} parent=5 // pred_check_branch
        %247 = sbr.rel (%p245) target = $region40
      $region39: #{tpu_custom_call.1} parent=5 // pred_region
        %s248 = ssub.s32 %s12, 2
        // Predicated region
        $region41: #{tpu_custom_call.1} parent=39 // pred_check
          %p249 = pneg %p114
        $region42: #{tpu_custom_call.1} parent=39 // pred_check_branch
          %251 = sbr.rel (%p249) target = $region44
        $region43: #{tpu_custom_call.1} parent=39 // pred_region
          %s252 = sand.u32 %s99, 1
          %s253 = scalar_lea.sflag [#allocation3], %s252
          %s254 = sand.u32 %s99, 1
          %s255 = smul.addr %s254, 8
          %s256 = scalar_lea.vmem [#allocation2], %s255
          %257 = dma.done %s253, 128
        $region44: #{tpu_custom_call.1} parent=39 // pred_fallthru
          _
      $region40: #{tpu_custom_call.1} parent=5 // pred_fallthru
        _
    $region6: #{tpu_custom_call.1} parent=1 // loop_footer
      %s16 = sadd.s32 1, %s12
    $region7: #{tpu_custom_call.1} parent=1 // loop_footer_branch
      %11 = sbr.rel target = $region3
    $region8: #{tpu_custom_call.1} parent=1 // loop_exit
      _
    %258 = vsyncpa [#allocation3], 1
    %s259 = scalar_lea.sflag [#allocation3], 1
    %260 = vsyncpa %s259, 1

</llo_original>
